<compile_context>
chip_gen: v7x
topology: tpu7x:2x2x1
jax: 0.10.0
libtpu: 0.0.40
codegen_flags: <defaults>
</compile_context>

<pallas_src>
import math

import numpy as np
import jax
import jax.numpy as jnp
from jax.experimental import pallas as pl
from jax.experimental.pallas import tpu as pltpu


# ---------------------------------------------------------------------------
# Kernels
# ---------------------------------------------------------------------------

def _rowwise_kernel(time_ref, freqs_ref, phase_ref, out_ref):
    # time_ref : (TB, 1)    f32
    # freqs_ref: (1, dim)   f32  = [f, f]          (trace-time constant)
    # phase_ref: (1, dim)   f32  = [0.., pi/2..]   (trace-time constant)
    # out_ref  : (TB, dim)  f32
    out_ref[...] = jnp.sin(time_ref[...] * freqs_ref[...] + phase_ref[...])


def _packed_kernel(time_ref, expand_ref, freqs_ref, phase_ref, out_ref):
    # time_ref  : (TR, pack)  f32 — `pack` timesteps per 128-lane output row
    # expand_ref: (pack, 128) f32 0/1 — lane expansion on the idle MXU
    # freqs_ref : (1, 128)    f32, phase_ref: (1, 128) f32
    # out_ref   : (TR, 128)   f32 — fully lane-dense (unmasked) stores
    t128 = jnp.dot(time_ref[...], expand_ref[...],
                   preferred_element_type=jnp.float32)      # (TR, 128)
    out_ref[...] = jnp.sin(t128 * freqs_ref[...] + phase_ref[...])


# ---------------------------------------------------------------------------
# Tiling helpers
# ---------------------------------------------------------------------------

def _largest_tile(total, cap):
    """Largest multiple-of-8 divisor of `total` (a multiple of 8) that is <= cap."""
    n8 = total // 8
    cap8 = max(1, min(cap, total) // 8)
    best = 1
    for d in range(1, int(math.isqrt(n8)) + 1):
        if n8 % d == 0:
            for q in (d, n8 // d):
                if q <= cap8 and q > best:
                    best = q
    return best * 8


def _pick_tile(total, cap):
    """Tile choice: divisor of `total` (no big pads), >= 2 grid steps when possible."""
    if total >= 16:
        cap = min(cap, total // 2)   # keep >= 2 "parallel" steps for v7x megacore
    return _largest_tile(total, cap)


# ---------------------------------------------------------------------------
# Wrapper
# ---------------------------------------------------------------------------

def _rowwise_embed(time, dim, freqs_full, phase_full, block_b):
    B = time.shape[0]
    b_pad = ((B + 7) // 8) * 8
    t2d = time.reshape(B, 1)
    if b_pad != B:
        t2d = jnp.pad(t2d, ((0, b_pad - B), (0, 0)))

    # double-buffered out tile <= ~8 MiB (v5e has 16 MiB default scoped VMEM)
    vmem_cap = max(8, (8 << 20) // (dim * 4 * 2))
    tb = _pick_tile(b_pad, min(block_b, vmem_cap))
    grid = (b_pad // tb,)

    freqs2d = jnp.asarray(freqs_full.reshape(1, dim))
    phase2d = jnp.asarray(phase_full.reshape(1, dim))

    out = pl.pallas_call(
        _rowwise_kernel,
        out_shape=jax.ShapeDtypeStruct((b_pad, dim), jnp.float32),
        grid=grid,
        in_specs=[
            pl.BlockSpec((tb, 1), lambda i: (i, 0)),      # per-tile timesteps
            pl.BlockSpec((1, dim), lambda i: (0, 0)),     # shared freq table
            pl.BlockSpec((1, dim), lambda i: (0, 0)),     # shared phase table
        ],
        out_specs=pl.BlockSpec((tb, dim), lambda i: (i, 0)),
        compiler_params=pltpu.CompilerParams(
            dimension_semantics=("parallel",)),
    )(t2d, freqs2d, phase2d)

    return out[:B] if b_pad != B else out


def _packed_embed(time, dim, freqs_full, phase_full, block_b):
    B = time.shape[0]
    pack = 128 // dim                      # timesteps per 128-lane output row
    unit = 8 * pack                        # keep packed-row count a multiple of 8
    b_pad = ((B + unit - 1) // unit) * unit
    rows = b_pad // pack

    t = time
    if b_pad != B:
        t = jnp.pad(t, (0, b_pad - B))
    t_packed = t.reshape(rows, pack)

    vmem_cap_rows = max(8, (8 << 20) // (128 * 4 * 2))
    tr = _pick_tile(rows, min(max(block_b // pack, 8), vmem_cap_rows))
    grid = (rows // tr,)

    # lane-expansion matrix: output lane c belongs to packed timestep c // dim
    expand_np = np.kron(np.eye(pack, dtype=np.float32),
                        np.ones((1, dim), dtype=np.float32))          # (pack, 128)
    expand = jnp.asarray(expand_np)
    freqs128 = jnp.asarray(np.tile(freqs_full, pack).reshape(1, 128))
    phase128 = jnp.asarray(np.tile(phase_full, pack).reshape(1, 128))

    out = pl.pallas_call(
        _packed_kernel,
        out_shape=jax.ShapeDtypeStruct((rows, 128), jnp.float32),
        grid=grid,
        in_specs=[
            pl.BlockSpec((tr, pack), lambda i: (i, 0)),   # packed timesteps
            pl.BlockSpec((pack, 128), lambda i: (0, 0)),  # lane-expansion matrix
            pl.BlockSpec((1, 128), lambda i: (0, 0)),     # shared freq table
            pl.BlockSpec((1, 128), lambda i: (0, 0)),     # shared phase table
        ],
        out_specs=pl.BlockSpec((tr, 128), lambda i: (i, 0)),
        compiler_params=pltpu.CompilerParams(
            dimension_semantics=("parallel",)),
    )(t_packed, expand, freqs128, phase128)

    out = out.reshape(b_pad, dim)          # byte-identical row-major view
    return out[:B] if b_pad != B else out


def sinusoidal_position_embeddings(time, dim, block_b=2048):
    """time: (B,) float array of timesteps. Returns (B, dim) float32 embeddings."""
    assert dim % 2 == 0, "dim must be even (PyTorch concat(sin, cos) semantics)"
    half = dim // 2
    assert half > 1, "dim must be >= 4 to avoid division by zero in the scale"

    time = jnp.asarray(time, dtype=jnp.float32).reshape(-1)

    # Constant-fold frequency / phase tables at trace time.
    scale = math.log(10000.0) / (half - 1)
    freqs = np.exp(np.arange(half, dtype=np.float32) * (-scale)).astype(np.float32)
    freqs_full = np.concatenate([freqs, freqs]).astype(np.float32)            # (dim,)
    phase_full = np.concatenate([np.zeros(half, np.float32),
                                 np.full(half, np.pi / 2, np.float32)])       # (dim,)

    if dim < 128 and 128 % dim == 0:
        return _packed_embed(time, dim, freqs_full, phase_full, block_b)
    return _rowwise_embed(time, dim, freqs_full, phase_full, block_b)


# ---------------------------------------------------------------------------
# Reference + test
# ---------------------------------------------------------------------------

def _reference(time, dim):
    half = dim // 2
    scale = math.log(10000.0) / (half - 1)
    freqs = jnp.exp(jnp.arange(half, dtype=jnp.float32) * (-scale))
    args = time[:, None] * freqs[None, :]
    return jnp.concatenate([jnp.sin(args), jnp.cos(args)], axis=-1)


if __name__ == "__main__":
    key = jax.random.PRNGKey(0)

    # Small test consistent with the module: diffusion timesteps in [0, 1000).
    batch = 8
    dim = 32                                   # exercises the lane-dense packed path
    time = jax.random.uniform(key, (batch,), dtype=jnp.float32) * 1000.0

    emb = jax.block_until_ready(sinusoidal_position_embeddings(time, dim))
    ref = _reference(time, dim)
    assert emb.shape == (batch, dim), emb.shape
    # cos(x) is computed as sin(x + pi/2); for args ~1e3 the f32 rounding of the
    # phase add bounds the deviation vs jnp.cos at ~ulp(1e3)/2 ~= 6e-5.
    assert jnp.allclose(emb, ref, atol=2e-4, rtol=1e-5), \
        float(jnp.max(jnp.abs(emb - ref)))

    # Also exercise the row-wise path (dim >= 128), 2 parallel grid steps.
    batch2, dim2 = 16, 256
    time2 = jax.random.uniform(jax.random.PRNGKey(1), (batch2,), dtype=jnp.float32) * 1000.0
    emb2 = jax.block_until_ready(sinusoidal_position_embeddings(time2, dim2))
    ref2 = _reference(time2, dim2)
    assert emb2.shape == (batch2, dim2), emb2.shape
    assert jnp.allclose(emb2, ref2, atol=2e-4, rtol=1e-5), \
        float(jnp.max(jnp.abs(emb2 - ref2)))

    print("KERNEL_OK")
</pallas_src>

<mosaic_0001>
module attributes {stable_mosaic.version = 11 : i64} {
  func.func @_packed_kernel(%arg0: i32, %arg1: memref<8x4xf32, #tpu.memory_space<vmem>>, %arg2: memref<4x128xf32, #tpu.memory_space<vmem>>, %arg3: memref<1x128xf32, #tpu.memory_space<vmem>>, %arg4: memref<1x128xf32, #tpu.memory_space<vmem>>, %arg5: memref<8x128xf32, #tpu.memory_space<vmem>>) attributes {dimension_semantics = [#tpu.dimension_semantics<parallel>], iteration_bounds = array<i64: 1>, scalar_prefetch = 0 : i64, scratch_operands = 0 : i64, tpu.core_type = #tpu.core_type<tc>, window_params = [{transform_indices = @transform_0, window_bounds = array<i64: 8, 4>}, {pipeline_mode = #tpu.pipeline_mode<synchronous>, transform_indices = @transform_1, window_bounds = array<i64: 4, 128>}, {pipeline_mode = #tpu.pipeline_mode<synchronous>, transform_indices = @transform_2, window_bounds = array<i64: 1, 128>}, {pipeline_mode = #tpu.pipeline_mode<synchronous>, transform_indices = @transform_3, window_bounds = array<i64: 1, 128>}, {transform_indices = @transform_4, window_bounds = array<i64: 8, 128>}]} {
    %c0 = arith.constant 0 : index
    %c0_0 = arith.constant 0 : index
    %0 = vector.load %arg1[%c0, %c0_0] : memref<8x4xf32, #tpu.memory_space<vmem>>, vector<8x4xf32>
    %c0_1 = arith.constant 0 : index
    %c0_2 = arith.constant 0 : index
    %1 = vector.load %arg2[%c0_1, %c0_2] : memref<4x128xf32, #tpu.memory_space<vmem>>, vector<4x128xf32>
    %cst = arith.constant dense<0.000000e+00> : vector<8x128xf32>
    %2 = tpu.matmul %0, %1, %cst {dimension_numbers = #tpu.dot_dimension_numbers<[1], [0], [0], [1], [0, 0, 1, 1], [], []>} : vector<8x4xf32>, vector<4x128xf32>, vector<8x128xf32> -> vector<8x128xf32>
    %c0_3 = arith.constant 0 : index
    %c0_4 = arith.constant 0 : index
    %3 = vector.load %arg3[%c0_3, %c0_4] : memref<1x128xf32, #tpu.memory_space<vmem>>, vector<1x128xf32>
    %4 = vector.broadcast %3 : vector<1x128xf32> to vector<8x128xf32>
    %5 = arith.mulf %2, %4 : vector<8x128xf32>
    %c0_5 = arith.constant 0 : index
    %c0_6 = arith.constant 0 : index
    %6 = vector.load %arg4[%c0_5, %c0_6] : memref<1x128xf32, #tpu.memory_space<vmem>>, vector<1x128xf32>
    %7 = vector.broadcast %6 : vector<1x128xf32> to vector<8x128xf32>
    %8 = arith.addf %5, %7 : vector<8x128xf32>
    %9 = math.sin %8 : vector<8x128xf32>
    %c0_7 = arith.constant 0 : index
    %c0_8 = arith.constant 0 : index
    %10 = vector.load %arg5[%c0_7, %c0_8] : memref<8x128xf32, #tpu.memory_space<vmem>>, vector<8x128xf32>
    tpu.vector_store %arg5[%c0_7, %c0_8], %9 {strides = array<i32>} : memref<8x128xf32, #tpu.memory_space<vmem>>, vector<8x128xf32>,
    return
  }
  func.func @transform_0(%arg0: i32) -> (i32, i32) {
    %c0_i32 = arith.constant 0 : i32
    %c0_i32_0 = arith.constant 0 : i32
    return %arg0, %c0_i32 : i32, i32
  }
  func.func @transform_1(%arg0: i32) -> (i32, i32) {
    %c0_i32 = arith.constant 0 : i32
    %c0_i32_0 = arith.constant 0 : i32
    %c0_i32_1 = arith.constant 0 : i32
    return %c0_i32, %c0_i32_0 : i32, i32
  }
  func.func @transform_2(%arg0: i32) -> (i32, i32) {
    %c0_i32 = arith.constant 0 : i32
    %c0_i32_0 = arith.constant 0 : i32
    %c0_i32_1 = arith.constant 0 : i32
    return %c0_i32, %c0_i32_0 : i32, i32
  }
  func.func @transform_3(%arg0: i32) -> (i32, i32) {
    %c0_i32 = arith.constant 0 : i32
    %c0_i32_0 = arith.constant 0 : i32
    %c0_i32_1 = arith.constant 0 : i32
    return %c0_i32, %c0_i32_0 : i32, i32
  }
  func.func @transform_4(%arg0: i32) -> (i32, i32) {
    %c0_i32 = arith.constant 0 : i32
    %c0_i32_0 = arith.constant 0 : i32
    return %arg0, %c0_i32 : i32, i32
  }
}

</mosaic_0001>

<llo_original>
// kernel: tpu_custom_call.1
$region0: #{tpu_custom_call.1}
  #allocation0 [shape = 'u32[]', space=smem, size = 0x4, offset = 0x4, fixed_abs, tag = 'smem constant byte address 0x4 - core index']
  #allocation1 [shape = 'u32[144,128]{1,0:T(1,128)}', space=vmem, size = 0x12000, scoped, tag = 'internal scratch']
  %s0 = inlined_call_operand.vmem [shape: f32[8,4], index: 0, kind: input, shape index: {}]
  %s1 = inlined_call_operand.vmem [shape: f32[4,128], index: 1, kind: input, shape index: {}]
  %s2 = inlined_call_operand.vmem [shape: f32[1,128], index: 2, kind: input, shape index: {}]
  %s3 = inlined_call_operand.vmem [shape: f32[1,128], index: 3, kind: input, shape index: {}]
  %s4 = inlined_call_operand.hbm [shape: f32[8,128], index: 4, kind: output, shape index: {}]
  %s5 = sld [smem:[#allocation0]]
  $region26: #{tpu_custom_call.1} parent=0
    _
  %s7 = ssub.s32 1, %s5
  %s8 = scalar_select 0, %s7, %s5
  $region1: #{tpu_custom_call.1} parent=0
    #allocation2 [shape = 'u8[4096]{0}', space=vmem, size = 0x1000, scoped, tag = 'output window, operand 0, single buffered']
    #allocation3 [shape = 's32[1]{0}', space=sflag, size = 0x4, scoped, tag = 'scoped memory for tpu_custom_call.1']
    %9 = vsyncpa [#allocation3], 0
    // Predicated region
    $region2: #{tpu_custom_call.1} parent=1 // pred_check
      _
    $region3: #{tpu_custom_call.1} parent=1 // pred_check_branch
      %11 = sbr.rel (0) target = $region5
    $region4: #{tpu_custom_call.1} parent=1 // pred_region
      _
    $region5: #{tpu_custom_call.1} parent=1 // pred_fallthru
      _
    // Predicated region
    $region6: #{tpu_custom_call.1} parent=1 // pred_check
      _
    $region7: #{tpu_custom_call.1} parent=1 // pred_check_branch
      %13 = sbr.rel (0) target = $region9
    $region8: #{tpu_custom_call.1} parent=1 // pred_region
      _
    $region9: #{tpu_custom_call.1} parent=1 // pred_fallthru
      _
    // Predicated region
    $region10: #{tpu_custom_call.1} parent=1 // pred_check
      _
    $region11: #{tpu_custom_call.1} parent=1 // pred_check_branch
      %15 = sbr.rel (0) target = $region13
    $region12: #{tpu_custom_call.1} parent=1 // pred_region
      _
    $region13: #{tpu_custom_call.1} parent=1 // pred_fallthru
      _
    // Predicated region
    $region14: #{tpu_custom_call.1} parent=1 // pred_check
      _
    $region15: #{tpu_custom_call.1} parent=1 // pred_check_branch
      %17 = sbr.rel (0) target = $region17
    $region16: #{tpu_custom_call.1} parent=1 // pred_region
      _
    $region17: #{tpu_custom_call.1} parent=1 // pred_fallthru
      _
    %v18 = vld [vmem:[%s0] sm:$0xff]
    %v19 = vld [vmem:[%s1] sm:$0xf]
    %vm20 = vcmask 31744
    %v22 = vsel %vm20, %v18, 0
    %vm24 = vcmask 1043456
    %v26 = vsel %vm24, %v19, 0
    %28 = vmatprep.subr.mxu0 0.0
    %29 = vmatpush1.msra.mxu0 %v26
    %30 = vmatprep.subr.mxu0 0.0
    %31 = vmatpush1.msra.mxu0 0.0
    %32 = vmatprep.subr.mxu0 0.0
    %33 = vmatpush1.msra.mxu0 0.0
    %34 = vmatprep.subr.mxu0 0.0
    %35 = vmatpush1.msra.mxu0 0.0
    %36 = vmatprep.subr.mxu0 0.0
    %37 = vmatpush1.msra.mxu0 0.0
    %38 = vmatprep.subr.mxu0 0.0
    %39 = vmatpush1.msra.mxu0 0.0
    %40 = vmatprep.subr.mxu0 0.0
    %41 = vmatpush1.msra.mxu0 0.0
    %42 = vmatprep.subr.mxu0 0.0
    %43 = vmatpush1.msra.mxu0 0.0
    %44 = vmatprep.subr.mxu0 0.0
    %45 = vmatpush1.msra.mxu0 0.0
    %46 = vmatprep.subr.mxu0 0.0
    %47 = vmatpush1.msra.mxu0 0.0
    %48 = vmatprep.subr.mxu0 0.0
    %49 = vmatpush1.msra.mxu0 0.0
    %50 = vmatprep.subr.mxu0 0.0
    %51 = vmatpush1.msra.mxu0 0.0
    %52 = vmatprep.subr.mxu0 0.0
    %53 = vmatpush1.msra.mxu0 0.0
    %54 = vmatprep.subr.mxu0 0.0
    %55 = vmatpush1.msra.mxu0 0.0
    %56 = vmatprep.subr.mxu0 0.0
    %57 = vmatpush1.msra.mxu0 0.0
    %58 = vmatprep.subr.mxu0 0.0
    %59 = vmatpush1.msra.mxu0 0.0
    %60 = vmatprep.subr.mxu0 0.0
    %61 = vmatpush1.msra.mxu0 0.0
    %62 = vmatprep.subr.mxu0 0.0
    %63 = vmatpush1.msra.mxu0 0.0
    %64 = vmatprep.subr.mxu0 0.0
    %65 = vmatpush1.msra.mxu0 0.0
    %66 = vmatprep.subr.mxu0 0.0
    %67 = vmatpush1.msra.mxu0 0.0
    %68 = vmatprep.subr.mxu0 0.0
    %69 = vmatpush1.msra.mxu0 0.0
    %70 = vmatprep.subr.mxu0 0.0
    %71 = vmatpush1.msra.mxu0 0.0
    %72 = vmatprep.subr.mxu0 0.0
    %73 = vmatpush1.msra.mxu0 0.0
    %74 = vmatprep.subr.mxu0 0.0
    %75 = vmatpush1.msra.mxu0 0.0
    %76 = vmatprep.subr.mxu0 0.0
    %77 = vmatpush1.msra.mxu0 0.0
    %78 = vmatprep.subr.mxu0 0.0
    %79 = vmatpush1.msra.mxu0 0.0
    %80 = vmatprep.subr.mxu0 0.0
    %81 = vmatpush1.msra.mxu0 0.0
    %82 = vmatprep.subr.mxu0 0.0
    %83 = vmatpush1.msra.mxu0 0.0
    %84 = vmatprep.subr.mxu0 0.0
    %85 = vmatpush1.msra.mxu0 0.0
    %86 = vmatprep.subr.mxu0 0.0
    %87 = vmatpush1.msra.mxu0 0.0
    %88 = vmatprep.subr.mxu0 0.0
    %89 = vmatpush1.msra.mxu0 0.0
    %90 = vmatprep.subr.mxu0 0.0
    %91 = vmatpush1.msra.mxu0 0.0
    %92 = vmatprep.mubr.f32.mxu0 0.0
    %93 = vmatmul.mubr.f32.gmra.mrb[0].mxu0 %v22
    %v94 = vpop.f32.mrb[0].mxu0
    %v95 = vadd.f32 0.0, %v94
    %v96 = vpop.f32.mrb[0].mxu0
    %97 = vdwg.mxu0
    %v98 = vld [vmem:[%s2] sm:$0x1]
    %v100 = vlaneseq
    %v101 = vshrl.u32 %v100, 7
    %v102 = vsub.s32 0, %v101
    %v103 = vrot.slane %v98, %v102
    %v105 = vmul.f32 %v95, %v103
    %v106 = vld [vmem:[%s3] sm:$0x1]
    %v108 = vlaneseq
    %v109 = vshrl.u32 %v108, 7
    %v110 = vsub.s32 0, %v109
    %v111 = vrot.slane %v106, %v110
    %v113 = vadd.f32 %v105, %v111
    %v114 = vand.u32 2147483647, %v113
    %vm115 = vcmp.le.f32.partialorder %v114, 0.7853982
    %vm116 = vcmp.lt.s32.totalorder %v113, 0
    %v117 = vand.u32 %v113, 2139095040
    %v118 = vshrl.u32 %v117, 23
    %v119 = vsub.s32 %v118, 127
    %v120 = vand.u32 2147483647, %v113
    %v121 = vand.u32 %v120, 8388607
    %v122 = vor.u32 %v121, 8388608
    %v123 = vsub.s32 0, %v122
    %v124 = vadd.s32 %v119, 1
    %vm125 = vcmp.gt.s32.totalorder %v124, 0
    %v126 = vsel %vm125, %v124, 0
    %v127 = vshrl.u32 %v126, 5
    %v128 = vand.u32 %v126, 31
    %v129 = vsub.s32 32, %v128
    %v130 = vshrl.u32 683565275, %v129
    %v131 = vshll.u32 683565275, %v128
    %v132 = vshrl.u32 2475754826, %v129
    %v133 = vor.u32 %v131, %v132
    %v134 = vshll.u32 2475754826, %v128
    %v135 = vshrl.u32 2131351028, %v129
    %v136 = vor.u32 %v134, %v135
    %v137 = vshll.u32 2131351028, %v128
    %v138 = vshrl.u32 2102212464, %v129
    %v139 = vor.u32 %v137, %v138
    %v140 = vshll.u32 2102212464, %v128
    %v141 = vshrl.u32 920167782, %v129
    %v142 = vor.u32 %v140, %v141
    %v143 = vshll.u32 920167782, %v128
    %v144 = vshrl.u32 1326507024, %v129
    %v145 = vor.u32 %v143, %v144
    %vm146 = vcmp.lt.s32.totalorder %v127, 1
    %vm147 = vcmp.lt.s32.totalorder %v127, 2
    %vm148 = vcmp.lt.s32.totalorder %v127, 3
    %vm149 = vcmp.lt.s32.totalorder %v127, 4
    %v150 = vsel %vm146, %v130, %v133
    %v151 = vsel %vm149, %v139, 2102212464
    %v152 = vsel %vm148, %v136, %v151
    %v153 = vsel %vm147, %v150, %v152
    %v154 = vsel %vm146, %v133, %v136
    %v155 = vsel %vm149, %v142, 920167782
    %v156 = vsel %vm148, %v139, %v155
    %v157 = vsel %vm147, %v154, %v156
    %v158 = vsel %vm146, %v136, %v139
    %v159 = vsel %vm149, %v145, 1326507024
    %v160 = vsel %vm148, %v142, %v159
    %v161 = vsel %vm147, %v158, %v160
    %v162 = vshll.u32 %v122, 8
    %v163 = vmul.u32.u64.compose %v162, %v161
    %v164 = vextract.low.u32 %v163
    %v165 = vextract.high.u32 %v163
    %v166 = vmul.u32.u64.compose %v162, %v157
    %v167 = vextract.low.u32 %v166
    %v168 = vextract.high.u32 %v166
    %v169 = vmul.u32 %v162, %v153
    %v170 = vadd.s32 %v165, %v167
    %vm171 = vc.u32 %v165, %v167
    %v172 = vadd.s32 %v168, 1
    %v173 = vsel %vm171, %v172, %v168
    %v174 = vadd.s32 %v169, %v173
    %v175 = vadd.s32 %v174, 536870912
    %v176 = vshrl.u32 %v175, 30
    %v177 = vshll.u32 %v176, 30
    %v178 = vsub.s32 %v174, %v177
    %vm179 = vcmp.lt.s32.totalorder %v178, 0
    %v180 = vsub.s32 0, %v178
    %v181 = vsel %vm179, %v180, %v178
    %v182 = vclz %v181
    %v183 = vsub.s32 %v182, 2
    %vm184 = vcmp.gt.s32.totalorder 0, %v183
    %v185 = vsel %vm184, 0, %v183
    %v186 = vsub.s32 32, %v185
    %v187 = vshll.u32 %v178, %v185
    %v188 = vshrl.u32 %v170, %v186
    %v189 = vor.u32 %v187, %v188
    %v190 = vsub.s32 4294967266, %v185
    %v191 = vadd.s32 %v190, 127
    %v192 = vshll.u32 %v191, 23
    %v193 = vor.u32 4788187, %v192
    %v194 = vand.u32 2147483647, %v193
    %v196 = vcvt.s32.f32 %v189
    %v197 = vmul.f32 %v196, %v194
    %v198 = vxor.u32 %v197, 2147483648
    %v199 = vsel %vm116, %v198, %v197
    %v200 = vsub.s32 4, %v176
    %v201 = vsel %vm116, %v200, %v176
    %v202 = vsel %vm115, %v113, %v199
    %v203 = vsel %vm115, 0, %v201
    %v204 = vcosq.f32.pop %v202
    %v205 = vsinq.f32.pop %v202
    %vm206 = vweird.f32 %v113
    %v207 = vadd.s32 %v203, 3
    %v208 = vand.u32 %v207, 3
    %vm209 = vcmp.lt.s32.totalorder %v208, 2
    %vm210 = vcmp.eq.s32.totalorder %v208, 0
    %v211 = vxor.u32 %v205, 2147483648
    %v212 = vsel %vm210, %v204, %v211
    %vm213 = vcmp.eq.s32.totalorder %v208, 2
    %v214 = vxor.u32 %v204, 2147483648
    %v215 = vsel %vm213, %v214, %v205
    %v216 = vsel %vm209, %v212, %v215
    %v217 = vsel %vm206, nan, %v216
    %218 = vst [vmem:[#allocation2] sm:$0xff] %v217
    // Predicated region
    $region18: #{tpu_custom_call.1} parent=1 // pred_check
      _
    $region19: #{tpu_custom_call.1} parent=1 // pred_check_branch
      %220 = sbr.rel (0) target = $region21
    $region20: #{tpu_custom_call.1} parent=1 // pred_region
      %s222 = ssub.s32 128, 128
      %223 = vsyncadd [#allocation3], %s222
      %s225 = sshll.u32 [#allocation2], 4
      %s226 = int_to_ptr.vmem [resolvable:$true] %s225
      %228 = dma.vmem_to_hbm [thread:$0]  %s226, 128, %s4, [#allocation3]
    $region21: #{tpu_custom_call.1} parent=1 // pred_fallthru
      _
    // Predicated region
    $region22: #{tpu_custom_call.1} parent=1 // pred_check
      _
    $region23: #{tpu_custom_call.1} parent=1 // pred_check_branch
      %230 = sbr.rel (0) target = $region25
    $region24: #{tpu_custom_call.1} parent=1 // pred_region
      %231 = dma.done [#allocation3], 128
    $region25: #{tpu_custom_call.1} parent=1 // pred_fallthru
      _
    %232 = vsyncpa [#allocation3], 1

</llo_original>
